<compile_context>
chip_gen: v5e
topology: v5e:2x2
jax: 0.10.0
libtpu: 0.0.40
codegen_flags: <defaults>
</compile_context>

<pallas_src>
import functools

import jax
import jax.numpy as jnp
from jax.experimental import pallas as pl
from jax.experimental.pallas import tpu as pltpu

_LANE = 128


def _contrastive_loss_kernel(o1_ref, o2_ref, lab_ref, psum_ref, acc_ref, *,
                             inv_temp, batch, block_rows, tiles_per_shard,
                             epi_r, epi_c, chunk, any_padding):
    shard = pl.program_id(0)
    t = pl.program_id(1)

    @pl.when(t == 0)
    def _init():
        acc_ref[...] = jnp.zeros(acc_ref.shape, acc_ref.dtype)

    _, feat = o1_ref.shape
    nchunks = max(feat // chunk, 1)

    # --- Row statistics: single pass over D-chunks.  Each x1/x2 chunk is read
    # from VMEM exactly once and feeds all three lane-wise partials.
    a = o1_ref[:, 0:chunk].astype(jnp.float32)
    b = o2_ref[:, 0:chunk].astype(jnp.float32)
    # TODO(synk): for bf16 inputs on v7x the products could stay on the bf16
    # VALU (accumulate in f32); kept f32 here for exact parity with PyTorch.
    p11 = a * a
    p22 = b * b
    p12 = a * b
    for cidx in range(1, nchunks):
        a = o1_ref[:, cidx * chunk:(cidx + 1) * chunk].astype(jnp.float32)
        b = o2_ref[:, cidx * chunk:(cidx + 1) * chunk].astype(jnp.float32)
        p11 += a * a
        p22 += b * b
        p12 += a * b

    # One cross-lane reduce per statistic.  The leading-dim split
    # (TB, chunk) -> (EPI_R, EPI_C, chunk) is a free view; the reduce leaves
    # the stats lane-dense: tile row r -> element (r // EPI_C, r % EPI_C).
    s11 = jnp.sum(p11.reshape(epi_r, epi_c, chunk), axis=-1)
    s22 = jnp.sum(p22.reshape(epi_r, epi_c, chunk), axis=-1)
    s12 = jnp.sum(p12.reshape(epi_r, epi_c, chunk), axis=-1)

    y = lab_ref[0]                        # (EPI_R, EPI_C), lane-dense labels

    # --- F.normalize(eps=1e-12) on both inputs, then CosineSimilarity(eps=1e-8).
    n1 = jnp.sqrt(s11)
    n2 = jnp.sqrt(s22)
    d1 = jnp.maximum(n1, 1e-12)
    d2 = jnp.maximum(n2, 1e-12)
    # Divide by each norm separately (d1 * d2 could overflow f32 for huge rows).
    dot = (s12 * pl.reciprocal(d1)) * pl.reciprocal(d2)
    nn1 = n1 * pl.reciprocal(d1)          # norms of normalized rows (==1 unless underflow)
    nn2 = n2 * pl.reciprocal(d2)
    cos = dot * pl.reciprocal(jnp.maximum(nn1 * nn2, 1e-8))
    sim = cos * inv_temp                  # logits, (EPI_R, EPI_C)

    # Numerically stable binary_cross_entropy_with_logits, per example.
    per_ex = (jnp.maximum(sim, 0.0) - sim * y
              + jnp.log1p(jnp.exp(-jnp.abs(sim))))

    if any_padding:
        tile_start = (shard * tiles_per_shard + t) * block_rows
        has_pad = tile_start + block_rows > batch

        @pl.when(jnp.logical_not(has_pad))
        def _accumulate_full():
            acc_ref[...] += per_ex

        @pl.when(has_pad)
        def _accumulate_masked():
            rr = jax.lax.broadcasted_iota(jnp.int32, (epi_r, epi_c), 0)
            cc = jax.lax.broadcasted_iota(jnp.int32, (epi_r, epi_c), 1)
            global_row = tile_start + rr * epi_c + cc
            acc_ref[...] += jnp.where(global_row < batch, per_ex, 0.0)
    else:
        acc_ref[...] += per_ex

    @pl.when(t == pl.num_programs(1) - 1)
    def _finalize():
        total = jnp.sum(acc_ref[...], keepdims=True)          # (1, 1)
        psum_ref[...] = jnp.broadcast_to(total, psum_ref.shape)


def _num_tensorcores():
    """TensorCores usable by the 'parallel' grid axis (v7x: 2, v5e/v6e: 1)."""
    try:
        dev = jax.devices()[0]
    except Exception:
        return 1
    n = getattr(dev, "num_cores", None)
    if isinstance(n, int) and n > 0:
        return max(1, min(int(n), 2))
    kind = str(getattr(dev, "device_kind", "")).lower()
    if "v7" in kind or "7x" in kind:
        return 2
    return 1


def _vmem_capacity_bytes():
    try:
        return int(pltpu.get_tpu_info().vmem_capacity_bytes)
    except Exception:
        return 64 << 20            # conservative per-TensorCore floor (v7x)


def _pick_chunk(feat):
    """Chunk width (lanes) for the single-pass statistics loop."""
    if feat <= 512:
        return feat
    for c in (512, 256, 128):
        if feat % c == 0:
            return c
    return feat


def _pick_block_rows(batch, feat, itemsize, vmem_target):
    # Per grid step (one buffer): two embedding tiles + lane-dense f32 labels.
    per_row = 2 * feat * itemsize + 4
    usable = max(vmem_target - (8 << 20), 8 << 20)
    tb = usable // (2 * per_row)               # /2: BlockSpec double-buffers
    tb = min(tb, 2048)
    if batch <= tb:
        return batch
    if tb >= _LANE:
        return (tb // _LANE) * _LANE           # keep the epilogue lane-dense
    return max(8, (tb // 8) * 8)


def contrastive_loss(output1, output2, label, temperature=0.2,
                     block_rows=None, num_shards=None):
    """output1, output2: [B, D] float arrays; label: [B]. Returns scalar loss."""
    B, D = output1.shape
    itemsize = jnp.dtype(output1.dtype).itemsize

    vmem_cap = _vmem_capacity_bytes()
    vmem_target = (vmem_cap * 3) // 4          # ~48 MiB on v7x, ~96 MiB on v5e/v6e

    if block_rows is None:
        TB = _pick_block_rows(B, D, itemsize, vmem_target)
    else:
        TB = min(B, int(block_rows))
        if TB < B:
            TB = max(8, (TB // 8) * 8)
    num_tiles = pl.cdiv(B, TB)

    # Shard the batch across TensorCores only where it buys parallelism.
    if num_shards is None:
        num_shards = _num_tensorcores()
    num_shards = max(1, min(int(num_shards), num_tiles))
    tiles_per_shard = pl.cdiv(num_tiles, num_shards)
    total_tiles = num_shards * tiles_per_shard   # includes padded shard tiles
    any_padding = (total_tiles * TB) != B

    # Lane-dense epilogue layout: TB rows -> (EPI_R, EPI_C) with rows on lanes.
    epi_c = _LANE if TB % _LANE == 0 else TB
    epi_r = TB // epi_c
    chunk = _pick_chunk(D)

    # Labels laid out lane-dense wrapper-side: one dense (EPI_R, EPI_C) block
    # per tile; padded rows get label 0 (masked in the kernel anyway).
    lab = label.reshape(-1).astype(jnp.float32)
    pad = total_tiles * TB - B
    if pad:
        lab = jnp.concatenate([lab, jnp.zeros((pad,), jnp.float32)])
    lab = lab.reshape(total_tiles, epi_r, epi_c)

    kernel = functools.partial(
        _contrastive_loss_kernel,
        inv_temp=1.0 / float(temperature), batch=B, block_rows=TB,
        tiles_per_shard=tiles_per_shard, epi_r=epi_r, epi_c=epi_c,
        chunk=chunk, any_padding=any_padding)

    # Double-buffered input tiles + headroom, capped at ~3/4 of this part's VMEM.
    tile_bytes = 2 * TB * (2 * D * itemsize + 4)
    vmem_limit = int(min(max(tile_bytes + (8 << 20), 16 << 20), vmem_target))

    last_tile = num_tiles - 1

    def emb_map(i, t):
        # Clamp padded shard tiles onto the last real tile; the kernel's row
        # mask zeroes their contribution.
        return (jnp.minimum(i * tiles_per_shard + t, last_tile), 0)

    def lab_map(i, t):
        return (i * tiles_per_shard + t, 0, 0)

    psums = pl.pallas_call(
        kernel,
        out_shape=jax.ShapeDtypeStruct((1, _LANE * num_shards), jnp.float32),
        grid=(num_shards, tiles_per_shard),
        in_specs=[
            pl.BlockSpec((TB, D), emb_map),
            pl.BlockSpec((TB, D), emb_map),
            pl.BlockSpec((1, epi_r, epi_c), lab_map),
        ],
        out_specs=pl.BlockSpec((1, _LANE), lambda i, t: (0, i)),
        scratch_shapes=[pltpu.VMEM((epi_r, epi_c), jnp.float32)],
        compiler_params=pltpu.CompilerParams(
            dimension_semantics=("parallel", "arbitrary"),
            vmem_limit_bytes=vmem_limit),
    )(output1, output2, lab)

    partials = psums.reshape(num_shards, _LANE)[:, 0]   # one value per shard
    return jnp.sum(partials) / B


if __name__ == "__main__":
    key = jax.random.PRNGKey(0)
    k1, k2, k3 = jax.random.split(key, 3)

    def ref(o1, o2, y, t=0.2):
        n1 = jnp.linalg.norm(o1, axis=1, keepdims=True)
        n2 = jnp.linalg.norm(o2, axis=1, keepdims=True)
        o1n = o1 / jnp.maximum(n1, 1e-12)
        o2n = o2 / jnp.maximum(n2, 1e-12)
        dot = jnp.sum(o1n * o2n, axis=-1)
        denom = jnp.maximum(jnp.linalg.norm(o1n, axis=-1) * jnp.linalg.norm(o2n, axis=-1), 1e-8)
        sim = (dot / denom) / t
        per = jnp.maximum(sim, 0.0) - sim * y + jnp.log1p(jnp.exp(-jnp.abs(sim)))
        return jnp.mean(per)

    # Primary small case (single tile).
    B, D = 8, 32
    o1 = jax.random.normal(k1, (B, D), dtype=jnp.float32)
    o2 = jax.random.normal(k2, (B, D), dtype=jnp.float32)
    lab = jax.random.bernoulli(k3, 0.5, (B,)).astype(jnp.float32)
    loss = jax.block_until_ready(contrastive_loss(o1, o2, lab, temperature=0.2))
    assert jnp.allclose(loss, ref(o1, o2, lab), atol=1e-5), (loss, ref(o1, o2, lab))

    # Multi-tile path (shard axis + vector accumulator).
    B2 = 32
    o1b = jax.random.normal(k1, (B2, D), dtype=jnp.float32)
    o2b = jax.random.normal(k2, (B2, D), dtype=jnp.float32)
    labb = jax.random.bernoulli(k3, 0.5, (B2,)).astype(jnp.float32)
    loss2 = jax.block_until_ready(contrastive_loss(o1b, o2b, labb, 0.2, block_rows=8))
    assert jnp.allclose(loss2, ref(o1b, o2b, labb), atol=1e-5), (loss2, ref(o1b, o2b, labb))

    # Ragged tail: B not a multiple of the tile -> masked last (and padded) tiles.
    B3 = 20
    o1c = jax.random.normal(k1, (B3, D), dtype=jnp.float32)
    o2c = jax.random.normal(k2, (B3, D), dtype=jnp.float32)
    labc = jax.random.bernoulli(k3, 0.5, (B3,)).astype(jnp.float32)
    loss3 = jax.block_until_ready(contrastive_loss(o1c, o2c, labc, 0.2, block_rows=8))
    assert jnp.allclose(loss3, ref(o1c, o2c, labc), atol=1e-5), (loss3, ref(o1c, o2c, labc))

    # Fully lane-dense (EPI_C = 128) epilogue path.
    B4, D4 = 256, 64
    o1d = jax.random.normal(k1, (B4, D4), dtype=jnp.float32)
    o2d = jax.random.normal(k2, (B4, D4), dtype=jnp.float32)
    labd = jax.random.bernoulli(k3, 0.5, (B4,)).astype(jnp.float32)
    loss4 = jax.block_until_ready(contrastive_loss(o1d, o2d, labd, 0.2, block_rows=128))
    assert jnp.allclose(loss4, ref(o1d, o2d, labd), atol=1e-5), (loss4, ref(o1d, o2d, labd))

    # Multi-chunk statistics pass (D > 512).
    B5, D5 = 16, 1024
    o1e = jax.random.normal(k1, (B5, D5), dtype=jnp.float32)
    o2e = jax.random.normal(k2, (B5, D5), dtype=jnp.float32)
    labe = jax.random.bernoulli(k3, 0.5, (B5,)).astype(jnp.float32)
    loss5 = jax.block_until_ready(contrastive_loss(o1e, o2e, labe, 0.2))
    assert jnp.allclose(loss5, ref(o1e, o2e, labe), atol=1e-5), (loss5, ref(o1e, o2e, labe))

    print("KERNEL_OK")
</pallas_src>

<mosaic_0001>
module attributes {stable_mosaic.version = 11 : i64} {
  func.func @_contrastive_loss_kernel(%arg0: i32, %arg1: i32, %arg2: memref<8x32xf32, #tpu.memory_space<vmem>>, %arg3: memref<8x32xf32, #tpu.memory_space<vmem>>, %arg4: memref<1x1x8xf32, #tpu.memory_space<vmem>>, %arg5: memref<1x128xf32, #tpu.memory_space<vmem>>, %arg6: memref<1x8xf32, #tpu.memory_space<vmem>>) attributes {dimension_semantics = [#tpu.dimension_semantics<parallel>, #tpu.dimension_semantics<arbitrary>], iteration_bounds = array<i64: 1, 1>, scalar_prefetch = 0 : i64, scratch_operands = 1 : i64, tpu.core_type = #tpu.core_type<tc>, window_params = [{transform_indices = @transform_0, window_bounds = array<i64: 8, 32>}, {transform_indices = @transform_1, window_bounds = array<i64: 8, 32>}, {transform_indices = @transform_2, window_bounds = array<i64: 1, 1, 8>}, {transform_indices = @transform_3, window_bounds = array<i64: 1, 128>}]} {
    %c0_i32 = arith.constant 0 : i32
    %0 = arith.cmpi eq, %arg1, %c0_i32 : i32
    %1 = arith.extui %0 : i1 to i32
    %c0_i32_0 = arith.constant 0 : i32
    %2 = arith.cmpi ne, %1, %c0_i32_0 : i32
    scf.if %2 {
      %cst_21 = arith.constant 0.000000e+00 : f32
      %53 = vector.broadcast %cst_21 : f32 to vector<1x8xf32>
      %c0_22 = arith.constant 0 : index
      %c0_23 = arith.constant 0 : index
      %54 = vector.load %arg6[%c0_22, %c0_23] : memref<1x8xf32, #tpu.memory_space<vmem>>, vector<1x8xf32>
      tpu.vector_store %arg6[%c0_22, %c0_23], %53 {strides = array<i32>} : memref<1x8xf32, #tpu.memory_space<vmem>>, vector<1x8xf32>,
    } else {
    }
    %c0 = arith.constant 0 : index
    %c0_1 = arith.constant 0 : index
    %3 = vector.load %arg2[%c0, %c0_1] : memref<8x32xf32, #tpu.memory_space<vmem>>, vector<8x32xf32>
    %c0_2 = arith.constant 0 : index
    %c0_3 = arith.constant 0 : index
    %4 = vector.load %arg3[%c0_2, %c0_3] : memref<8x32xf32, #tpu.memory_space<vmem>>, vector<8x32xf32>
    %5 = arith.mulf %3, %3 : vector<8x32xf32>
    %6 = arith.mulf %4, %4 : vector<8x32xf32>
    %7 = arith.mulf %3, %4 : vector<8x32xf32>
    %8 = vector.shape_cast %5 : vector<8x32xf32> to vector<1x8x32xf32>
    %cst = arith.constant dense<0.000000e+00> : vector<1x8xf32>
    %9 = vector.multi_reduction <add>, %8, %cst [2] : vector<1x8x32xf32> to vector<1x8xf32>
    %10 = vector.shape_cast %6 : vector<8x32xf32> to vector<1x8x32xf32>
    %cst_4 = arith.constant dense<0.000000e+00> : vector<1x8xf32>
    %11 = vector.multi_reduction <add>, %10, %cst_4 [2] : vector<1x8x32xf32> to vector<1x8xf32>
    %12 = vector.shape_cast %7 : vector<8x32xf32> to vector<1x8x32xf32>
    %cst_5 = arith.constant dense<0.000000e+00> : vector<1x8xf32>
    %13 = vector.multi_reduction <add>, %12, %cst_5 [2] : vector<1x8x32xf32> to vector<1x8xf32>
    %c0_6 = arith.constant 0 : index
    %c0_7 = arith.constant 0 : index
    %c0_8 = arith.constant 0 : index
    %14 = vector.load %arg4[%c0_6, %c0_7, %c0_8] : memref<1x1x8xf32, #tpu.memory_space<vmem>>, vector<1x1x8xf32>
    %15 = vector.shape_cast %14 : vector<1x1x8xf32> to vector<1x8xf32>
    %16 = math.sqrt %9 : vector<1x8xf32>
    %17 = math.sqrt %11 : vector<1x8xf32>
    %cst_9 = arith.constant 9.99999996E-13 : f32
    %18 = vector.broadcast %cst_9 : f32 to vector<1x8xf32>
    %19 = arith.maximumf %16, %18 : vector<1x8xf32>
    %cst_10 = arith.constant 9.99999996E-13 : f32
    %20 = vector.broadcast %cst_10 : f32 to vector<1x8xf32>
    %21 = arith.maximumf %17, %20 : vector<1x8xf32>
    %22 = tpu.reciprocal %19 : vector<1x8xf32> -> vector<1x8xf32>
    %23 = arith.mulf %13, %22 : vector<1x8xf32>
    %24 = tpu.reciprocal %21 : vector<1x8xf32> -> vector<1x8xf32>
    %25 = arith.mulf %23, %24 : vector<1x8xf32>
    %26 = tpu.reciprocal %19 : vector<1x8xf32> -> vector<1x8xf32>
    %27 = arith.mulf %16, %26 : vector<1x8xf32>
    %28 = tpu.reciprocal %21 : vector<1x8xf32> -> vector<1x8xf32>
    %29 = arith.mulf %17, %28 : vector<1x8xf32>
    %30 = arith.mulf %27, %29 : vector<1x8xf32>
    %cst_11 = arith.constant 9.99999993E-9 : f32
    %31 = vector.broadcast %cst_11 : f32 to vector<1x8xf32>
    %32 = arith.maximumf %30, %31 : vector<1x8xf32>
    %33 = tpu.reciprocal %32 : vector<1x8xf32> -> vector<1x8xf32>
    %34 = arith.mulf %25, %33 : vector<1x8xf32>
    %cst_12 = arith.constant 5.000000e+00 : f32
    %35 = vector.broadcast %cst_12 : f32 to vector<1x8xf32>
    %36 = arith.mulf %34, %35 : vector<1x8xf32>
    %cst_13 = arith.constant 0.000000e+00 : f32
    %37 = vector.broadcast %cst_13 : f32 to vector<1x8xf32>
    %38 = arith.maximumf %36, %37 : vector<1x8xf32>
    %39 = arith.mulf %36, %15 : vector<1x8xf32>
    %40 = arith.subf %38, %39 : vector<1x8xf32>
    %41 = math.absf %36 : vector<1x8xf32>
    %cst_14 = arith.constant 0.000000e+00 : f32
    %42 = vector.broadcast %cst_14 : f32 to vector<1x8xf32>
    %43 = arith.subf %42, %41 : vector<1x8xf32>
    %44 = math.exp %43 : vector<1x8xf32>
    %45 = math.log1p %44 : vector<1x8xf32>
    %46 = arith.addf %40, %45 : vector<1x8xf32>
    %c0_15 = arith.constant 0 : index
    %c0_16 = arith.constant 0 : index
    %47 = vector.load %arg6[%c0_15, %c0_16] : memref<1x8xf32, #tpu.memory_space<vmem>>, vector<1x8xf32>
    %48 = arith.addf %47, %46 : vector<1x8xf32>
    %c0_17 = arith.constant 0 : index
    %c0_18 = arith.constant 0 : index
    %49 = vector.load %arg6[%c0_17, %c0_18] : memref<1x8xf32, #tpu.memory_space<vmem>>, vector<1x8xf32>
    tpu.vector_store %arg6[%c0_17, %c0_18], %48 {strides = array<i32>} : memref<1x8xf32, #tpu.memory_space<vmem>>, vector<1x8xf32>,
    %c0_i32_19 = arith.constant 0 : i32
    %50 = arith.cmpi eq, %arg1, %c0_i32_19 : i32
    %51 = arith.extui %50 : i1 to i32
    %c0_i32_20 = arith.constant 0 : i32
    %52 = arith.cmpi ne, %51, %c0_i32_20 : i32
    scf.if %52 {
      %c0_21 = arith.constant 0 : index
      %c0_22 = arith.constant 0 : index
      %53 = vector.load %arg6[%c0_21, %c0_22] : memref<1x8xf32, #tpu.memory_space<vmem>>, vector<1x8xf32>
      %54 = vector.shape_cast %53 : vector<1x8xf32> to vector<1x1x8xf32>
      %cst_23 = arith.constant dense<0.000000e+00> : vector<1xf32>
      %55 = vector.multi_reduction <add>, %54, %cst_23 [1, 2] : vector<1x1x8xf32> to vector<1xf32>
      %56 = vector.shape_cast %55 : vector<1xf32> to vector<1x1x1xf32>
      %57 = vector.extract %56[0, 0, 0] : f32 from vector<1x1x1xf32>
      %58 = vector.broadcast %57 : f32 to vector<1x1xf32>
      %59 = vector.shape_cast %58 : vector<1x1xf32> to vector<1x1xf32>
      %60 = vector.broadcast %59 : vector<1x1xf32> to vector<1x128xf32>
      %c0_24 = arith.constant 0 : index
      %c0_25 = arith.constant 0 : index
      %61 = vector.load %arg5[%c0_24, %c0_25] : memref<1x128xf32, #tpu.memory_space<vmem>>, vector<1x128xf32>
      tpu.vector_store %arg5[%c0_24, %c0_25], %60 {strides = array<i32>} : memref<1x128xf32, #tpu.memory_space<vmem>>, vector<1x128xf32>,
    } else {
    }
    return
  }
  func.func @transform_0(%arg0: i32, %arg1: i32) -> (i32, i32) {
    %c1_i32 = arith.constant 1 : i32
    %0 = arith.muli %arg0, %c1_i32 : i32
    %1 = arith.addi %0, %arg1 : i32
    %c0_i32 = arith.constant 0 : i32
    %2 = arith.minsi %1, %c0_i32 : i32
    %c0_i32_0 = arith.constant 0 : i32
    %c0_i32_1 = arith.constant 0 : i32
    return %2, %c0_i32_0 : i32, i32
  }
  func.func @transform_1(%arg0: i32, %arg1: i32) -> (i32, i32) {
    %c1_i32 = arith.constant 1 : i32
    %0 = arith.muli %arg0, %c1_i32 : i32
    %1 = arith.addi %0, %arg1 : i32
    %c0_i32 = arith.constant 0 : i32
    %2 = arith.minsi %1, %c0_i32 : i32
    %c0_i32_0 = arith.constant 0 : i32
    %c0_i32_1 = arith.constant 0 : i32
    return %2, %c0_i32_0 : i32, i32
  }
  func.func @transform_2(%arg0: i32, %arg1: i32) -> (i32, i32, i32) {
    %c1_i32 = arith.constant 1 : i32
    %0 = arith.muli %arg0, %c1_i32 : i32
    %1 = arith.addi %0, %arg1 : i32
    %c0_i32 = arith.constant 0 : i32
    %c0_i32_0 = arith.constant 0 : i32
    %c0_i32_1 = arith.constant 0 : i32
    return %1, %c0_i32, %c0_i32_0 : i32, i32, i32
  }
  func.func @transform_3(%arg0: i32, %arg1: i32) -> (i32, i32) {
    %c0_i32 = arith.constant 0 : i32
    %c0_i32_0 = arith.constant 0 : i32
    return %c0_i32, %arg0 : i32, i32
  }
}

</mosaic_0001>

<llo_original>
// kernel: tpu_custom_call.1
$region0: #{tpu_custom_call.1}
  #allocation0 [shape = 'u32[]', space=smem, size = 0x4, offset = 0x4, fixed_abs, tag = 'smem constant byte address 0x4 - core index']
  #allocation1 [shape = 'u32[72,128]{1,0:T(1,128)}', space=vmem, size = 0x9000, scoped, tag = 'internal scratch']
  #allocation2 [shape = 'f32[1,8]{1,0:T(1,128)}', space=vmem, size = 0x200, scoped, tag = 'scratch operand']
  %s0 = inlined_call_operand.hbm [shape: f32[8,32], index: 0, kind: input, shape index: {}]
  %s1 = inlined_call_operand.hbm [shape: f32[8,32], index: 1, kind: input, shape index: {}]
  %s2 = inlined_call_operand.vmem [shape: f32[1,1,8], index: 2, kind: input, shape index: {}]
  %s3 = inlined_call_operand.hbm [shape: f32[1,128], index: 3, kind: output, shape index: {}]
  %s4 = sld [smem:[#allocation0]]
  $region38: #{tpu_custom_call.1} parent=0
    _
  %s6 = ssub.s32 1, %s4
  %s7 = scalar_select 0, %s6, %s4
  $region1: #{tpu_custom_call.1} parent=0
    #allocation3 [shape = 'u8[4096]{0}', space=vmem, size = 0x1000, scoped, tag = 'input window, operand 0, single buffered']
    #allocation4 [shape = 's32[1]{0}', space=sflag, size = 0x4, scoped, tag = 'scoped memory for tpu_custom_call.1']
    #allocation5 [shape = 's32[1]{0}', space=sflag, size = 0x4, scoped, tag = 'scoped memory for tpu_custom_call.1']
    #allocation6 [shape = 'u8[4096]{0}', space=vmem, size = 0x1000, scoped, tag = 'input window, operand 1, single buffered']
    #allocation7 [shape = 's32[1]{0}', space=sflag, size = 0x4, scoped, tag = 'scoped memory for tpu_custom_call.1']
    #allocation8 [shape = 'u8[512]{0}', space=vmem, size = 0x400, scoped, tag = 'output window, operand 0, single buffered']
    %8 = vsyncpa [#allocation4], 0
    %9 = vsyncpa [#allocation7], 0
    %10 = vsyncpa [#allocation5], 0
    // Predicated region
    $region2: #{tpu_custom_call.1} parent=1 // pred_check
      _
    $region3: #{tpu_custom_call.1} parent=1 // pred_check_branch
      %12 = sbr.rel (0) target = $region5
    $region4: #{tpu_custom_call.1} parent=1 // pred_region
      %s13 = sadd.s32 0, 0
      %p14 = scmp.lt.s32.totalorder %s13, 0
      %s15 = scalar_select %p14, %s13, 0
      %17 = vsyncadd [#allocation4], 0
      %s18 = smul.addr %s15, 8
      %s19 = scalar_lea.hbm %s0, %s18
      %s21 = sshll.u32 %s19, 4
      %s22 = int_to_ptr.hbm [resolvable:$true] %s21
      %s23 = sshll.u32 [#allocation3], 4
      %s24 = int_to_ptr.vmem [resolvable:$true] %s23
      %26 = dma.hbm_to_vmem [thread:$0]  %s22, 128, %s24, [#allocation4]
    $region5: #{tpu_custom_call.1} parent=1 // pred_fallthru
      _
    // Predicated region
    $region6: #{tpu_custom_call.1} parent=1 // pred_check
      _
    $region7: #{tpu_custom_call.1} parent=1 // pred_check_branch
      %28 = sbr.rel (0) target = $region9
    $region8: #{tpu_custom_call.1} parent=1 // pred_region
      %s29 = sadd.s32 0, 0
      %p30 = scmp.lt.s32.totalorder %s29, 0
      %s31 = scalar_select %p30, %s29, 0
      %33 = vsyncadd [#allocation7], 0
      %s34 = smul.addr %s31, 8
      %s35 = scalar_lea.hbm %s1, %s34
      %s37 = sshll.u32 %s35, 4
      %s38 = int_to_ptr.hbm [resolvable:$true] %s37
      %s39 = sshll.u32 [#allocation6], 4
      %s40 = int_to_ptr.vmem [resolvable:$true] %s39
      %42 = dma.hbm_to_vmem [thread:$0]  %s38, 128, %s40, [#allocation7]
    $region9: #{tpu_custom_call.1} parent=1 // pred_fallthru
      _
    // Predicated region
    $region10: #{tpu_custom_call.1} parent=1 // pred_check
      _
    $region11: #{tpu_custom_call.1} parent=1 // pred_check_branch
      %44 = sbr.rel (0) target = $region13
    $region12: #{tpu_custom_call.1} parent=1 // pred_region
      %s45 = sadd.s32 0, 0
      %p46 = scmp.lt.s32.totalorder %s45, 0
      %s47 = scalar_select %p46, %s45, 0
      %s48 = scalar_lea.vmem %s2, %s47
      %s49 = sadd.s32 0, 0
    $region13: #{tpu_custom_call.1} parent=1 // pred_fallthru
      _
    // Predicated region
    $region14: #{tpu_custom_call.1} parent=1 // pred_check
      _
    $region15: #{tpu_custom_call.1} parent=1 // pred_check_branch
      %51 = sbr.rel (0) target = $region17
    $region16: #{tpu_custom_call.1} parent=1 // pred_region
      %53 = dma.done [#allocation4], 128
    $region17: #{tpu_custom_call.1} parent=1 // pred_fallthru
      _
    // Predicated region
    $region18: #{tpu_custom_call.1} parent=1 // pred_check
      _
    $region19: #{tpu_custom_call.1} parent=1 // pred_check_branch
      %55 = sbr.rel (0) target = $region21
    $region20: #{tpu_custom_call.1} parent=1 // pred_region
      %57 = dma.done [#allocation7], 128
    $region21: #{tpu_custom_call.1} parent=1 // pred_fallthru
      _
    %s58 = sadd.s32 0, 0
    %p59 = scmp.lt.s32.totalorder %s58, 0
    %s60 = scalar_select %p59, %s58, 0
    %s61 = scalar_lea.vmem %s2, %s60
    %s62 = sadd.s32 0, 0
    %p63 = scmp.lt.s32.totalorder %s62, 0
    %s64 = scalar_select %p63, %s62, 0
    %s65 = sadd.s32 0, 0
    %p66 = scmp.lt.s32.totalorder %s65, 0
    %s67 = scalar_select %p66, %s65, 0
    %s68 = sadd.s32 0, 0
    %p69 = scmp.lt.s32.totalorder %s68, 0
    %s70 = scalar_select %p69, %s68, 0
    %s71 = scalar_lea.vmem %s2, %s70
    %s72 = sadd.s32 0, 0
    %p73 = scmp.eq.s32.totalorder 0, 0
    // Predicated region
    $region22: #{tpu_custom_call.1} parent=1 // pred_check
      %p74 = pneg %p73
    $region23: #{tpu_custom_call.1} parent=1 // pred_check_branch
      %76 = sbr.rel (%p74) target = $region25
    $region24: #{tpu_custom_call.1} parent=1 // pred_region
      %vm77 = vcmask 57344
      %78 = vst.msk [vmem:[#allocation2] sm:$0x1] %vm77, 0.0
    $region25: #{tpu_custom_call.1} parent=1 // pred_fallthru
      _
    %v79 = vld [vmem:[#allocation3] sm:$0xff]
    %v80 = vld [vmem:[#allocation6] sm:$0xff]
    %v81 = vmul.f32 %v79, %v79
    %v82 = vmul.f32 %v80, %v80
    %v83 = vmul.f32 %v79, %v80
    %vm84 = vcmask 261120
    %v85 = vsel %vm84, %v81, 0.0
    %86 = vadd.xlane.f32.xlu0 %v85
    %v87 = vpop.xlane.xlu0 %86
    %v88 = vsel %vm84, %v82, 0.0
    %89 = vadd.xlane.f32.xlu0 %v88
    %v90 = vpop.xlane.xlu0 %89
    %v91 = vsel %vm84, %v83, 0.0
    %92 = vadd.xlane.f32.xlu0 %v91
    %v93 = vpop.xlane.xlu0 %92
    %v94 = vld [vmem:[%s71] sm:$0x1]
    %v95 = vrsqrt.pop %v87
    %v96 = vmul.f32 %v95, %v87
    %v97 = vmul.f32 %v96, %v95
    %v98 = vmul.f32 0.5, %v97
    %v99 = vsub.f32 1.5, %v98
    %v100 = vmul.f32 %v95, %v99
    %v101 = vmul.f32 %v87, %v100
    %vm102 = vcmp.eq.f32.partialorder %v87, inf
    %v103 = vsel %vm102, %v87, %v101
    %vm104 = vcmp.eq.f32.partialorder %v87, 0.0
    %v105 = vand.u32 %v87, 2147483648
    %v106 = vsel %vm104, %v105, %v103
    %v107 = vrsqrt.pop %v90
    %v108 = vmul.f32 %v107, %v90
    %v109 = vmul.f32 %v108, %v107
    %v110 = vmul.f32 0.5, %v109
    %v111 = vsub.f32 1.5, %v110
    %v112 = vmul.f32 %v107, %v111
    %v113 = vmul.f32 %v90, %v112
    %vm114 = vcmp.eq.f32.partialorder %v90, inf
    %v115 = vsel %vm114, %v90, %v113
    %vm116 = vcmp.eq.f32.partialorder %v90, 0.0
    %v117 = vand.u32 %v90, 2147483648
    %v118 = vsel %vm116, %v117, %v115
    %v119 = vmax.f32 %v106, 1e-12
    %v120 = vmax.f32 %v118, 1e-12
    %v121 = vrcp.pop %v119
    %v122 = vmul.f32 %v119, %v121
    %v123 = vsub.f32 1.0, %v122
    %v124 = vmul.f32 %v121, %v123
    %v125 = vadd.f32 %v121, %v124
    %vm126 = vweird.f32 %v119
    %vm127 = vweird.f32 %v121
    %vm128 = vmor %vm126, %vm127
    %v129 = vsel %vm128, %v121, %v125
    %v130 = vand.u32 2147483647, %v119
    %vm131 = vcmp.eq.f32.partialorder %v130, 8.507059e+37
    %v132 = vand.u32 %v119, 2147483648
    %v133 = vor.u32 1.1754944e-38, %v132
    %v134 = vsel %vm131, %v133, %v129
    %v135 = vmul.f32 %v93, %v134
    %v136 = vrcp.pop %v120
    %v137 = vmul.f32 %v120, %v136
    %v138 = vsub.f32 1.0, %v137
    %v139 = vmul.f32 %v136, %v138
    %v140 = vadd.f32 %v136, %v139
    %vm141 = vweird.f32 %v120
    %vm142 = vweird.f32 %v136
    %vm143 = vmor %vm141, %vm142
    %v144 = vsel %vm143, %v136, %v140
    %v145 = vand.u32 2147483647, %v120
    %vm146 = vcmp.eq.f32.partialorder %v145, 8.507059e+37
    %v147 = vand.u32 %v120, 2147483648
    %v148 = vor.u32 1.1754944e-38, %v147
    %v149 = vsel %vm146, %v148, %v144
    %v150 = vmul.f32 %v135, %v149
    %v151 = vmul.f32 %v106, %v134
    %v152 = vmul.f32 %v118, %v149
    %v153 = vmul.f32 %v151, %v152
    %v154 = vmax.f32 %v153, 1e-08
    %v155 = vrcp.pop %v154
    %v156 = vmul.f32 %v154, %v155
    %v157 = vsub.f32 1.0, %v156
    %v158 = vmul.f32 %v155, %v157
    %v159 = vadd.f32 %v155, %v158
    %vm160 = vweird.f32 %v154
    %vm161 = vweird.f32 %v155
    %vm162 = vmor %vm160, %vm161
    %v163 = vsel %vm162, %v155, %v159
    %v164 = vand.u32 2147483647, %v154
    %vm165 = vcmp.eq.f32.partialorder %v164, 8.507059e+37
    %v166 = vand.u32 %v154, 2147483648
    %v167 = vor.u32 1.1754944e-38, %v166
    %v168 = vsel %vm165, %v167, %v163
    %v169 = vmul.f32 %v150, %v168
    %v170 = vmul.f32 %v169, 5.0
    %v171 = vmax.f32 %v170, 0.0
    %v173 = vperm.slane %v94, 0
    %v174 = vlaneseq
    %v175 = vshrl.u32 %v174, 7
    %177 = vset.pattern.permute.xlu0 %v175
    %178 = vperm.xlu0 %177, %v173
    %v179 = vpop.permute.xlu0 %178
    %v181 = vmul.f32 %v170, %v179
    %v182 = vsub.f32 %v171, %v181
    %v183 = vand.u32 2147483647, %v170
    %v184 = vsub.f32 0.0, %v183
    %v185 = vmul.f32 %v184, 1.442695
    %v186 = vpow.pop %v185
    %v187 = vadd.f32 %v186, 1.0
    %v188 = vlog2.pop %v187
    %v189 = vmul.f32 %v188, 0.6931472
    %v190 = vmul.f32 -0.5, %v186
    %v191 = vadd.f32 %v190, 1.0
    %v192 = vmul.f32 %v191, %v186
    %v193 = vand.u32 2147483647, %v186
    %vm194 = vcmp.lt.f32.partialorder %v193, 0.0004427343
    %v195 = vsel %vm194, %v192, %v189
    %v196 = vadd.f32 %v182, %v195
    %v197 = vld [vmem:[#allocation2] sm:$0x1]
    %v199 = vrot.slane %v196, 1
    %v200 = vrot.slane %v196, 2
    %v201 = vrot.slane %v196, 3
    %v202 = vrot.slane %v196, 4
    %v203 = vrot.slane %v196, 5
    %v204 = vrot.slane %v196, 6
    %v205 = vrot.slane %v196, 7
    %206 = vst [vmem:[#allocation1] ss:$9 sm:$0xff] %v196
    %s207 = scalar_lea.vmem [#allocation1], 1
    %208 = vst [vmem:[%s207] ss:$9 sm:$0xff] %v199
    %s209 = scalar_lea.vmem [#allocation1], 2
    %210 = vst [vmem:[%s209] ss:$9 sm:$0xff] %v200
    %s211 = scalar_lea.vmem [#allocation1], 3
    %212 = vst [vmem:[%s211] ss:$9 sm:$0xff] %v201
    %s213 = scalar_lea.vmem [#allocation1], 4
    %214 = vst [vmem:[%s213] ss:$9 sm:$0xff] %v202
    %s215 = scalar_lea.vmem [#allocation1], 5
    %216 = vst [vmem:[%s215] ss:$9 sm:$0xff] %v203
    %s217 = scalar_lea.vmem [#allocation1], 6
    %218 = vst [vmem:[%s217] ss:$9 sm:$0xff] %v204
    %s219 = scalar_lea.vmem [#allocation1], 7
    %220 = vst [vmem:[%s219] ss:$9 sm:$0xff] %v205
    %v221 = vld [vmem:[#allocation1] sm:$0xff]
    %222 = vset.pattern.permute.xlu0 0
    %223 = vperm.xlu0 %222, %v221
    %v224 = vpop.permute.xlu0 %223
    %v225 = vlaneseq
    %v226 = vand.u32 %v225, 127
    %v227 = vperm.slane %v224, %v226
    %v229 = vadd.f32 %v197, %v227
    %vm230 = vcmask 57344
    %231 = vst.msk [vmem:[#allocation2] sm:$0x1] %vm230, %v229
    // Predicated region
    $region26: #{tpu_custom_call.1} parent=1 // pred_check
      %p232 = pneg %p73
    $region27: #{tpu_custom_call.1} parent=1 // pred_check_branch
      %234 = sbr.rel (%p232) target = $region29
    $region28: #{tpu_custom_call.1} parent=1 // pred_region
      %v235 = vld [vmem:[#allocation2] sm:$0x1]
      %v236 = vsel %vm230, %v235, 0.0
      %237 = vadd.xlane.f32.xlu0 %v236
      %v238 = vpop.xlane.xlu0 %237
      %v239 = vrot.slane %v238, 4
      %v240 = vadd.f32 %v238, %v239
      %v241 = vrot.slane %v240, 2
      %v242 = vadd.f32 %v240, %v241
      %v243 = vrot.slane %v242, 1
      %v244 = vadd.f32 %v242, %v243
      %s245 = vtos %v244
      %v246 = vstv %s245
      %247 = vst [vmem:[#allocation8] sm:$0x1] %v246
    $region29: #{tpu_custom_call.1} parent=1 // pred_fallthru
      _
    // Predicated region
    $region30: #{tpu_custom_call.1} parent=1 // pred_check
      _
    $region31: #{tpu_custom_call.1} parent=1 // pred_check_branch
      %249 = sbr.rel (0) target = $region33
    $region32: #{tpu_custom_call.1} parent=1 // pred_region
      %251 = vsyncadd [#allocation5], 0
      %s253 = sshll.u32 [#allocation8], 4
      %s254 = int_to_ptr.vmem [resolvable:$true] %s253
      %s255 = sshll.u32 %s3, 4
      %s256 = int_to_ptr.hbm [resolvable:$true] %s255
      %258 = dma.vmem_to_hbm [thread:$0]  %s254, 16, %s256, [#allocation5]
    $region33: #{tpu_custom_call.1} parent=1 // pred_fallthru
      _
    // Predicated region
    $region34: #{tpu_custom_call.1} parent=1 // pred_check
      _
    $region35: #{tpu_custom_call.1} parent=1 // pred_check_branch
      %260 = sbr.rel (0) target = $region37
    $region36: #{tpu_custom_call.1} parent=1 // pred_region
      %262 = dma.done [#allocation5], 16
    $region37: #{tpu_custom_call.1} parent=1 // pred_fallthru
      _
    %263 = vsyncpa [#allocation4], 1
    %264 = vsyncpa [#allocation7], 1
    %265 = vsyncpa [#allocation5], 1

</llo_original>
